<compile_context>
chip_gen: v7x
topology: tpu7x:2x2x1
jax: 0.10.0
libtpu: 0.0.40
codegen_flags: <defaults>
</compile_context>

<pallas_src>
import functools
import math

import jax
import jax.numpy as jnp
from jax.experimental import pallas as pl
from jax.experimental.pallas import tpu as pltpu


# ----------------------------------------------------------------------------
# Hardware queries (trace-time only; robust fallbacks).
# ----------------------------------------------------------------------------
def _device_kind_lower():
    try:
        return jax.devices()[0].device_kind.lower()
    except Exception:
        return ""


def _vmem_capacity_bytes():
    try:
        info = pltpu.get_tpu_info()
        for attr in ("vmem_capacity_bytes", "vmem_bytes", "vmem_size_bytes"):
            cap = getattr(info, attr, None)
            if cap:
                return int(cap)
    except Exception:
        pass
    kind = _device_kind_lower()
    if "v7" in kind or "7x" in kind:
        return 64 << 20
    if kind:
        return 128 << 20
    return 64 << 20  # conservative default


def _bf16_compute_ok():
    # v5e (and older) have no bf16 VPU/EUP; only use bf16 compute on v6/v7.
    kind = _device_kind_lower()
    return ("v6" in kind) or ("v7" in kind) or ("7x" in kind)


def _sublane_multiple(dtype):
    bits = jnp.dtype(dtype).itemsize * 8
    if bits >= 32:
        return 8
    if bits == 16:
        return 16
    return 32


def _round_up(v, m):
    return ((v + m - 1) // m) * m


# ----------------------------------------------------------------------------
# Kernel
# ----------------------------------------------------------------------------
def _dyt_kernel(alpha_ref, x_ref, w_ref, b_ref, o_ref, *, compute_dtype):
    # alpha_ref: SMEM (1,) fp32.  x_ref: (tr, tl).
    # w_ref/b_ref: (tr, 1) for channels_first rows, or (1, tl) for channels_last.
    alpha = alpha_ref[0].astype(compute_dtype)
    x = x_ref[...].astype(compute_dtype)
    w = w_ref[...].astype(compute_dtype)
    b = b_ref[...].astype(compute_dtype)
    y = jnp.tanh(x * alpha) * w + b
    o_ref[...] = y.astype(o_ref.dtype)


def _dyt_2d(x2d, w2d, b2d, alpha, *, params_per_row):
    """x2d: (R, L).  w2d/b2d: (R, 1) if params_per_row else (1, L).  alpha: (1,)."""
    R, L = x2d.shape
    itemsize = x2d.dtype.itemsize
    sub = _sublane_multiple(x2d.dtype)

    # Generation-aware block budget / VMEM limit.
    vmem_cap = _vmem_capacity_bytes()
    if vmem_cap >= (100 << 20):      # v5e / v6e: 128 MiB VMEM
        block_bytes = 8 << 20
        vmem_limit = 80 << 20
    else:                            # v7x: 64 MiB VMEM per TensorCore
        block_bytes = 6 << 20
        vmem_limit = 48 << 20
    target_elems = max(1, block_bytes // itemsize)

    # Lane tile: capped; multiple of 128 whenever it actually tiles L.
    LANE_CAP = 16384  # multiple of 128
    tl = min(L, LANE_CAP)

    # Row (sublane) tile: fill the block budget.
    tr = max(1, target_elems // tl)
    if tr >= R:
        tr = R
        # Few rows: regrow the lane tile (multiples of 128) to refill budget.
        if tl < L:
            tl_want = max(128, target_elems // max(tr, 1))
            tl_want = (tl_want // 128) * 128
            tl = min(L, max(tl, tl_want))
    else:
        tr = max(sub, (tr // sub) * sub)

    # Guarantee >= 2 grid steps for megacore / v7x dual-TC when non-trivial.
    total_bytes = R * L * itemsize
    if (-(-R // tr) == 1) and (-(-L // tl) == 1) and total_bytes > (2 << 20):
        tr_half = max(sub, _round_up((R + 1) // 2, sub))
        tl_half = max(128, _round_up((L + 1) // 2, 128))
        if tr_half < R:
            tr = tr_half
        elif tl_half < L:
            tl = tl_half

    grid = (pl.cdiv(R, tr), pl.cdiv(L, tl))

    if params_per_row:
        w_spec = pl.BlockSpec((tr, 1), lambda i, j: (i, 0))
        b_spec = pl.BlockSpec((tr, 1), lambda i, j: (i, 0))
    else:
        w_spec = pl.BlockSpec((1, tl), lambda i, j: (0, j))
        b_spec = pl.BlockSpec((1, tl), lambda i, j: (0, j))

    alpha_smem = alpha.reshape(1).astype(jnp.float32)  # fp32 scalar path

    # Compute dtype: bf16 tiles stay bf16 on v6e/v7x (bf16 VPU/EUP), f32 else.
    if x2d.dtype == jnp.bfloat16 and _bf16_compute_ok():
        compute_dtype = jnp.bfloat16
    else:
        compute_dtype = jnp.float32

    n_elems = R * L
    bytes_accessed = 2 * n_elems * itemsize + (w2d.size + b2d.size) * w2d.dtype.itemsize

    return pl.pallas_call(
        functools.partial(_dyt_kernel, compute_dtype=compute_dtype),
        out_shape=jax.ShapeDtypeStruct((R, L), x2d.dtype),
        grid=grid,
        in_specs=[
            pl.BlockSpec(memory_space=pltpu.MemorySpace.SMEM),  # alpha (fp32)
            pl.BlockSpec((tr, tl), lambda i, j: (i, j)),        # x
            w_spec,                                             # weight
            b_spec,                                             # bias
        ],
        out_specs=pl.BlockSpec((tr, tl), lambda i, j: (i, j)),
        compiler_params=pltpu.CompilerParams(
            dimension_semantics=("parallel", "parallel"),
            vmem_limit_bytes=vmem_limit,
        ),
        cost_estimate=pl.CostEstimate(
            flops=4 * n_elems,
            transcendentals=n_elems,
            bytes_accessed=bytes_accessed,
        ),
    )(alpha_smem, x2d, w2d, b2d)


@functools.partial(jax.jit, static_argnames=("channels_last",))
def dynamic_tanh(x, alpha, weight, bias, channels_last=False):
    """JAX/Pallas equivalent of DynamicTanh.forward.

    channels_first (default): x is (N, C, *spatial), weight/bias shape (C,).
    channels_last:            x is (..., C), weight/bias shape (C,).
    """
    if channels_last:
        C = weight.shape[0]
        lead = x.shape[:-1]
        rows = math.prod(lead) if lead else 1
        x2d = x.reshape(rows, C)

        # Pack k logical rows into the lane dim when C is small so output
        # stores stay lane-dense; prefer k with (k*C) % 128 == 0, pad rows
        # (cropped afterwards) so no divisor of `rows` is required.
        k = 1
        if C < 128 and rows > 1:
            k_align = 128 // math.gcd(C, 128)
            if k_align * C <= 4096 and rows >= k_align:
                k = k_align * max(1, min(rows // k_align, max(1, 512 // (k_align * C))))
            else:
                k = min(rows, max(1, 512 // C))

        pad = ((-rows) % k) if k > 1 else 0
        if k > 1:
            if pad:
                x2d = jnp.concatenate(
                    [x2d, jnp.zeros((pad, C), dtype=x2d.dtype)], axis=0)
            x2d = x2d.reshape((rows + pad) // k, k * C)
            w_lane = jnp.tile(weight, k).reshape(1, k * C)
            b_lane = jnp.tile(bias, k).reshape(1, k * C)
        else:
            w_lane = weight.reshape(1, C)
            b_lane = bias.reshape(1, C)

        y2d = _dyt_2d(x2d, w_lane, b_lane, alpha, params_per_row=False)
        if k > 1:
            y2d = y2d.reshape(rows + pad, C)
            if pad:
                y2d = y2d[:rows]
        return y2d.reshape(x.shape)
    else:
        # x: (N, C, *spatial) -> (N*C, prod(spatial)); channel becomes a row
        # index (no transpose), lane dim is the (large) spatial extent.
        N, C = x.shape[0], x.shape[1]
        spatial = math.prod(x.shape[2:]) if x.ndim > 2 else 1
        x2d = x.reshape(N * C, spatial)
        w_rows = jnp.tile(weight, N).reshape(N * C, 1)
        b_rows = jnp.tile(bias, N).reshape(N * C, 1)
        y2d = _dyt_2d(x2d, w_rows, b_rows, alpha, params_per_row=True)
        return y2d.reshape(x.shape)


if __name__ == "__main__":
    key = jax.random.PRNGKey(0)

    # channels_first (default): NCHW input, per-channel weight/bias of size C.
    N, C, H, W = 2, 4, 16, 16
    x = jax.random.normal(key, (N, C, H, W), dtype=jnp.float32)

    alpha_init_value = 0.5
    alpha = jnp.ones((1,), dtype=jnp.float32) * alpha_init_value

    # Default module init (ones / zeros).
    weight = jnp.ones((C,), dtype=jnp.float32)
    bias = jnp.zeros((C,), dtype=jnp.float32)
    y = jax.block_until_ready(dynamic_tanh(x, alpha, weight, bias, channels_last=False))
    ref = jnp.tanh(alpha[0] * x) * weight[:, None, None] + bias[:, None, None]
    assert y.shape == x.shape and y.dtype == x.dtype
    assert jnp.allclose(y, ref, atol=1e-6, rtol=1e-6)

    # Non-trivial weight/bias to exercise the per-channel (per-row) mapping.
    w_r = jax.random.normal(jax.random.PRNGKey(2), (C,), dtype=jnp.float32)
    b_r = jax.random.normal(jax.random.PRNGKey(3), (C,), dtype=jnp.float32)
    y2 = jax.block_until_ready(dynamic_tanh(x, alpha, w_r, b_r, channels_first := False or False) if False else
                               jax.block_until_ready(dynamic_tanh(x, alpha, w_r, b_r, channels_last=False)))
    ref2 = jnp.tanh(alpha[0] * x) * w_r[:, None, None] + b_r[:, None, None]
    assert jnp.allclose(y2, ref2, atol=1e-6, rtol=1e-6)

    # channels_last path on a (B, S, C)-style input (exercises lane packing).
    x_cl = jax.random.normal(jax.random.PRNGKey(1), (2, 8, C), dtype=jnp.float32)
    y_cl = jax.block_until_ready(dynamic_tanh(x_cl, alpha, w_r, b_r, channels_last=True))
    ref_cl = jnp.tanh(alpha[0] * x_cl) * w_r + b_r
    assert y_cl.shape == x_cl.shape
    assert jnp.allclose(y_cl, ref_cl, atol=1e-6, rtol=1e-6)

    print("KERNEL_OK")
</pallas_src>

<mosaic_0001>
module attributes {stable_mosaic.version = 11 : i64} {
  func.func @_dyt_kernel(%arg0: i32, %arg1: i32, %arg2: memref<1xf32, #tpu.memory_space<smem>>, %arg3: memref<8x256xf32, #tpu.memory_space<vmem>>, %arg4: memref<8x1xf32, #tpu.memory_space<vmem>>, %arg5: memref<8x1xf32, #tpu.memory_space<vmem>>, %arg6: memref<8x256xf32, #tpu.memory_space<vmem>>) attributes {dimension_semantics = [#tpu.dimension_semantics<parallel>, #tpu.dimension_semantics<parallel>], iteration_bounds = array<i64: 1, 1>, scalar_prefetch = 0 : i64, scratch_operands = 0 : i64, tpu.core_type = #tpu.core_type<tc>, window_params = [{transform_indices = @transform_0, window_bounds = array<i64: 1>}, {transform_indices = @transform_1, window_bounds = array<i64: 8, 256>}, {transform_indices = @transform_2, window_bounds = array<i64: 8, 1>}, {transform_indices = @transform_3, window_bounds = array<i64: 8, 1>}, {transform_indices = @transform_4, window_bounds = array<i64: 8, 256>}]} {
    %c0 = arith.constant 0 : index
    %0 = memref.load %arg2[%c0] : memref<1xf32, #tpu.memory_space<smem>>
    %c0_0 = arith.constant 0 : index
    %c0_1 = arith.constant 0 : index
    %1 = vector.load %arg3[%c0_0, %c0_1] : memref<8x256xf32, #tpu.memory_space<vmem>>, vector<8x256xf32>
    %c0_2 = arith.constant 0 : index
    %c0_3 = arith.constant 0 : index
    %2 = vector.load %arg4[%c0_2, %c0_3] : memref<8x1xf32, #tpu.memory_space<vmem>>, vector<8x1xf32>
    %c0_4 = arith.constant 0 : index
    %c0_5 = arith.constant 0 : index
    %3 = vector.load %arg5[%c0_4, %c0_5] : memref<8x1xf32, #tpu.memory_space<vmem>>, vector<8x1xf32>
    %4 = vector.broadcast %0 : f32 to vector<8x256xf32>
    %5 = arith.mulf %1, %4 : vector<8x256xf32>
    %6 = math.tanh %5 : vector<8x256xf32>
    %7 = vector.broadcast %2 : vector<8x1xf32> to vector<8x256xf32>
    %8 = arith.mulf %6, %7 : vector<8x256xf32>
    %9 = vector.broadcast %3 : vector<8x1xf32> to vector<8x256xf32>
    %10 = arith.addf %8, %9 : vector<8x256xf32>
    %c0_6 = arith.constant 0 : index
    %c0_7 = arith.constant 0 : index
    %11 = vector.load %arg6[%c0_6, %c0_7] : memref<8x256xf32, #tpu.memory_space<vmem>>, vector<8x256xf32>
    tpu.vector_store %arg6[%c0_6, %c0_7], %10 {strides = array<i32>} : memref<8x256xf32, #tpu.memory_space<vmem>>, vector<8x256xf32>,
    return
  }
  func.func @transform_0(%arg0: i32, %arg1: i32) -> i32 {
    %c0_i32 = arith.constant 0 : i32
    %c0_i32_0 = arith.constant 0 : i32
    return %c0_i32 : i32
  }
  func.func @transform_1(%arg0: i32, %arg1: i32) -> (i32, i32) {
    %c0_i32 = arith.constant 0 : i32
    return %arg0, %arg1 : i32, i32
  }
  func.func @transform_2(%arg0: i32, %arg1: i32) -> (i32, i32) {
    %c0_i32 = arith.constant 0 : i32
    %c0_i32_0 = arith.constant 0 : i32
    return %arg0, %c0_i32 : i32, i32
  }
  func.func @transform_3(%arg0: i32, %arg1: i32) -> (i32, i32) {
    %c0_i32 = arith.constant 0 : i32
    %c0_i32_0 = arith.constant 0 : i32
    return %arg0, %c0_i32 : i32, i32
  }
  func.func @transform_4(%arg0: i32, %arg1: i32) -> (i32, i32) {
    %c0_i32 = arith.constant 0 : i32
    return %arg0, %arg1 : i32, i32
  }
}

</mosaic_0001>

<llo_original>
// kernel: tile.1
$region0: #{tile.1}
  %s0 = inlined_call_operand.vmem [shape: f32[2,4], index: 0, kind: input, shape index: {}]
  %s1 = inlined_call_operand.hbm [shape: f32[8,1], index: 1, kind: output, shape index: {}]
  $region1: #{tile.1} parent=0
    #allocation0 [shape = 'u8[4096]{0}', space=vmem, size = 0x1000, scoped, tag = 'operand span for operand 1']
    #allocation1 [shape = 's32[1]{0}', space=sflag, size = 0x4, scoped, tag = 'scoped memory for tile.1']
    #allocation2 [shape = 'u8[4096]{0}', space=vmem, size = 0x1000, scoped, tag = 'scoped mem for input reshape']
    %2 = vsyncpa [#allocation1], 0
    %s4 = sshllo.u32 0, 2
    %v5 = vld [vmem:[%s0] sm:%s4]
    %6 = vst [vmem:[#allocation2] sm:%s4] %v5
    %v7 = vld [vmem:[#allocation2] sm:$0x3]
    %vm8 = vcmask 7168
    %9 = vst.msk [vmem:[#allocation0] ss:$4 sm:$0x3] %vm8, %v7
    %v10 = vld [vmem:[#allocation2] sm:$0x3]
    %11 = vrot.lane.b32.xlu0 %v10, 127
    %v12 = vpop.permute.xlu0 %11
    %vm13 = vcmask 7168
    %s14 = scalar_lea.vmem [#allocation0], 1
    %15 = vst.msk [vmem:[%s14] ss:$4 sm:$0x3] %vm13, %v12
    %v16 = vld [vmem:[#allocation2] sm:$0x3]
    %17 = vrot.lane.b32.xlu0 %v16, 126
    %v18 = vpop.permute.xlu0 %17
    %vm19 = vcmask 7168
    %s20 = scalar_lea.vmem [#allocation0], 2
    %21 = vst.msk [vmem:[%s20] ss:$4 sm:$0x3] %vm19, %v18
    %v22 = vld [vmem:[#allocation2] sm:$0x3]
    %23 = vrot.lane.b32.xlu0 %v22, 125
    %v24 = vpop.permute.xlu0 %23
    %vm25 = vcmask 7168
    %s26 = scalar_lea.vmem [#allocation0], 3
    %27 = vst.msk [vmem:[%s26] ss:$4 sm:$0x3] %vm25, %v24
    %s29 = ssub.s32 128, 128
    %30 = vsyncadd [#allocation1], %s29
    %s32 = sshll.u32 [#allocation0], 4
    %s33 = int_to_ptr.vmem [resolvable:$true] %s32
    %35 = dma.vmem_to_hbm [thread:$0]  %s33, 128, %s1, [#allocation1]
    %36 = dma.done [#allocation1], 128
    %37 = vsyncpa [#allocation1], 1

// kernel: tile.13
$region0: #{tile.13}
  #allocation0 [shape = 's32[1]{0}', space=sflag, size = 0x4, scoped, tag = 'scoped memory for tile.13']
  %s0 = inlined_call_operand.vmem [shape: f32[4], index: 0, kind: input, shape index: {}]
  %s1 = inlined_call_operand.vmem [shape: f32[2,4], index: 1, kind: output, shape index: {}]
  // Predicated region
  $region2: #{tile.13} parent=0 // pred_check
    _
  $region3: #{tile.13} parent=0 // pred_check_branch
    %3 = sbr.rel (0) target = $region5
  $region4: #{tile.13} parent=0 // pred_region
    _
  $region5: #{tile.13} parent=0 // pred_fallthru
    _
  %v4 = vld [vmem:[%s0] ss:$0 sm:$0xff]
  %5 = vst [vmem:[%s1] sm:$0x3] %v4

</llo_original>
